<compile_context>
chip_gen: v6e
topology: v6e:2x2x1
jax: 0.10.0
libtpu: 0.0.40
codegen_flags: <defaults>
</compile_context>

<pallas_src>
import jax
import jax.numpy as jnp
from jax.experimental import pallas as pl
from jax.experimental.pallas import tpu as pltpu

Z_DIM = 64
HIDDEN = 256
IMG_DIM = 784


def _round_up(x, m):
    return (x + m - 1) // m * m


def generator_kernel(x_ref, w1_ref, b1_ref, w2_ref, b2_ref, o_ref):
    # Layer 1: Linear(64 -> 256) + LeakyReLU(0.1).  x/w1 are bf16, accumulate fp32.
    h = jnp.dot(x_ref[...], w1_ref[...], preferred_element_type=jnp.float32)
    h = h + b1_ref[...]                       # b1 is (1, 256), broadcasts over batch tile
    h = jnp.maximum(h, 0.1 * h)               # LeakyReLU(negative_slope=0.1)

    # Layer 2: Linear(256 -> 784) + Tanh.  Hidden activation never leaves VMEM.
    y = jnp.dot(h.astype(jnp.bfloat16), w2_ref[...], preferred_element_type=jnp.float32)
    y = y + b2_ref[...]                       # b2 is (1, 784)
    o_ref[...] = jnp.tanh(y).astype(o_ref.dtype)


def prepare_params(w1, b1, w2, b2):
    """One-time parameter prep (hoisted out of the per-call path).

    Casts matmul operands to bf16 (MXU-native, halves weight DMA); biases stay fp32.
    """
    return (w1.astype(jnp.bfloat16),
            b1.astype(jnp.float32).reshape(1, HIDDEN),
            w2.astype(jnp.bfloat16),
            b2.astype(jnp.float32).reshape(1, IMG_DIM))


def generator_forward(x, params, *, tm=512):
    """x: [B, Z_DIM] -> [B, IMG_DIM] float32.  params = prepare_params(w1, b1, w2, b2)."""
    w1_bf, b1_f32, w2_bf, b2_f32 = params
    B = x.shape[0]

    # Batch tile: multiple of 8 (sublane), capped at `tm`.  Ensure >=2 grid steps when
    # the batch allows it so both of v7x's TensorCores get work.
    TM = min(tm, _round_up(max(B, 8), 8))
    if B >= 16 and _round_up(B, TM) // TM < 2:
        TM = _round_up((B + 1) // 2, 8)
    B_pad = _round_up(B, TM)
    if B_pad != B:
        x = jnp.pad(x, ((0, B_pad - B), (0, 0)))
    x = x.astype(jnp.bfloat16)                # halve x DMA; matmul runs in bf16 anyway

    grid = (B_pad // TM,)
    out = pl.pallas_call(
        generator_kernel,
        out_shape=jax.ShapeDtypeStruct((B_pad, IMG_DIM), jnp.float32),
        grid=grid,
        in_specs=[
            pl.BlockSpec((TM, Z_DIM), lambda i: (i, 0)),
            # Weights / biases: constant index_map -> DMA'd once, VMEM-resident across
            # all batch-tile grid steps.
            pl.BlockSpec((Z_DIM, HIDDEN), lambda i: (0, 0)),
            pl.BlockSpec((1, HIDDEN), lambda i: (0, 0)),
            pl.BlockSpec((HIDDEN, IMG_DIM), lambda i: (0, 0)),
            pl.BlockSpec((1, IMG_DIM), lambda i: (0, 0)),
        ],
        out_specs=pl.BlockSpec((TM, IMG_DIM), lambda i: (i, 0)),
        compiler_params=pltpu.CompilerParams(
            dimension_semantics=("parallel",),      # shard batch tiles over v7x's 2 TCs
            vmem_limit_bytes=32 * 1024 * 1024,      # headroom for TM up to ~1024
        ),
    )(x, w1_bf, b1_f32, w2_bf, b2_f32)

    return out if B_pad == B else out[:B]     # row-slice only when batch was padded


def init_params(key):
    """Deterministic init mimicking PyTorch's default Linear init (U(-1/sqrt(fan_in), +))."""
    k1, k2, k3, k4 = jax.random.split(key, 4)
    bound1 = 1.0 / (Z_DIM ** 0.5)
    bound2 = 1.0 / (HIDDEN ** 0.5)
    w1 = jax.random.uniform(k1, (Z_DIM, HIDDEN), jnp.float32, -bound1, bound1)
    b1 = jax.random.uniform(k2, (1, HIDDEN), jnp.float32, -bound1, bound1)
    w2 = jax.random.uniform(k3, (HIDDEN, IMG_DIM), jnp.float32, -bound2, bound2)
    b2 = jax.random.uniform(k4, (1, IMG_DIM), jnp.float32, -bound2, bound2)
    return w1, b1, w2, b2


def reference_forward(x, w1, b1, w2, b2):
    h = x @ w1 + b1
    h = jnp.where(h > 0, h, 0.1 * h)
    return jnp.tanh(h @ w2 + b2)


if __name__ == "__main__":
    key = jax.random.PRNGKey(0)
    kx, kp = jax.random.split(key)

    # Small but non-trivial: batch=13 with tm=8 exercises the pad-to-tile path AND a
    # multi-step (2-tile) grid so the batch-tiled pipeline actually runs.
    batch = 13
    x = jax.random.normal(kx, (batch, Z_DIM), jnp.float32)   # latent noise z
    w1, b1, w2, b2 = init_params(kp)
    params = prepare_params(w1, b1, w2, b2)                   # one-time prep

    out = generator_forward(x, params, tm=8)
    out = jax.block_until_ready(out)

    ref = reference_forward(x, w1, b1, w2, b2)
    assert out.shape == (batch, IMG_DIM)
    # bf16 matmul operands (fp32 accumulation) -> relaxed tolerance vs fp32 reference.
    assert jnp.allclose(out, ref, atol=2e-2, rtol=0.0), float(jnp.max(jnp.abs(out - ref)))

    print("KERNEL_OK")
</pallas_src>

<mosaic_0001>
module attributes {stable_mosaic.version = 11 : i64} {
  func.func @generator_kernel(%arg0: i32, %arg1: memref<8x64xbf16, #tpu.memory_space<vmem>>, %arg2: memref<64x256xbf16, #tpu.memory_space<vmem>>, %arg3: memref<1x256xf32, #tpu.memory_space<vmem>>, %arg4: memref<256x784xbf16, #tpu.memory_space<vmem>>, %arg5: memref<1x784xf32, #tpu.memory_space<vmem>>, %arg6: memref<8x784xf32, #tpu.memory_space<vmem>>) attributes {dimension_semantics = [#tpu.dimension_semantics<parallel>], iteration_bounds = array<i64: 2>, scalar_prefetch = 0 : i64, scratch_operands = 0 : i64, tpu.core_type = #tpu.core_type<tc>, window_params = [{transform_indices = @transform_0, window_bounds = array<i64: 8, 64>}, {pipeline_mode = #tpu.pipeline_mode<synchronous>, transform_indices = @transform_1, window_bounds = array<i64: 64, 256>}, {pipeline_mode = #tpu.pipeline_mode<synchronous>, transform_indices = @transform_2, window_bounds = array<i64: 1, 256>}, {pipeline_mode = #tpu.pipeline_mode<synchronous>, transform_indices = @transform_3, window_bounds = array<i64: 256, 784>}, {pipeline_mode = #tpu.pipeline_mode<synchronous>, transform_indices = @transform_4, window_bounds = array<i64: 1, 784>}, {transform_indices = @transform_5, window_bounds = array<i64: 8, 784>}]} {
    %c0 = arith.constant 0 : index
    %c0_0 = arith.constant 0 : index
    %0 = vector.load %arg1[%c0, %c0_0] : memref<8x64xbf16, #tpu.memory_space<vmem>>, vector<8x64xbf16>
    %c0_1 = arith.constant 0 : index
    %c0_2 = arith.constant 0 : index
    %1 = vector.load %arg2[%c0_1, %c0_2] : memref<64x256xbf16, #tpu.memory_space<vmem>>, vector<64x256xbf16>
    %cst = arith.constant dense<0.000000e+00> : vector<8x256xf32>
    %2 = tpu.matmul %0, %1, %cst {dimension_numbers = #tpu.dot_dimension_numbers<[1], [0], [0], [1], [0, 0, 1, 1], [], []>} : vector<8x64xbf16>, vector<64x256xbf16>, vector<8x256xf32> -> vector<8x256xf32>
    %c0_3 = arith.constant 0 : index
    %c0_4 = arith.constant 0 : index
    %3 = vector.load %arg3[%c0_3, %c0_4] : memref<1x256xf32, #tpu.memory_space<vmem>>, vector<1x256xf32>
    %4 = vector.broadcast %3 : vector<1x256xf32> to vector<8x256xf32>
    %5 = arith.addf %2, %4 : vector<8x256xf32>
    %cst_5 = arith.constant 1.000000e-01 : f32
    %6 = vector.broadcast %cst_5 : f32 to vector<8x256xf32>
    %7 = arith.mulf %6, %5 : vector<8x256xf32>
    %8 = arith.maximumf %5, %7 : vector<8x256xf32>
    %9 = arith.truncf %8 : vector<8x256xf32> to vector<8x256xbf16>
    %c0_6 = arith.constant 0 : index
    %c0_7 = arith.constant 0 : index
    %10 = vector.load %arg4[%c0_6, %c0_7] : memref<256x784xbf16, #tpu.memory_space<vmem>>, vector<256x784xbf16>
    %cst_8 = arith.constant dense<0.000000e+00> : vector<8x784xf32>
    %11 = tpu.matmul %9, %10, %cst_8 {dimension_numbers = #tpu.dot_dimension_numbers<[1], [0], [0], [1], [0, 0, 1, 1], [], []>} : vector<8x256xbf16>, vector<256x784xbf16>, vector<8x784xf32> -> vector<8x784xf32>
    %c0_9 = arith.constant 0 : index
    %c0_10 = arith.constant 0 : index
    %12 = vector.load %arg5[%c0_9, %c0_10] : memref<1x784xf32, #tpu.memory_space<vmem>>, vector<1x784xf32>
    %13 = vector.broadcast %12 : vector<1x784xf32> to vector<8x784xf32>
    %14 = arith.addf %11, %13 : vector<8x784xf32>
    %15 = math.tanh %14 : vector<8x784xf32>
    %c0_11 = arith.constant 0 : index
    %c0_12 = arith.constant 0 : index
    %16 = vector.load %arg6[%c0_11, %c0_12] : memref<8x784xf32, #tpu.memory_space<vmem>>, vector<8x784xf32>
    tpu.vector_store %arg6[%c0_11, %c0_12], %15 {strides = array<i32>} : memref<8x784xf32, #tpu.memory_space<vmem>>, vector<8x784xf32>,
    return
  }
  func.func @transform_0(%arg0: i32) -> (i32, i32) {
    %c0_i32 = arith.constant 0 : i32
    %c0_i32_0 = arith.constant 0 : i32
    return %arg0, %c0_i32 : i32, i32
  }
  func.func @transform_1(%arg0: i32) -> (i32, i32) {
    %c0_i32 = arith.constant 0 : i32
    %c0_i32_0 = arith.constant 0 : i32
    %c0_i32_1 = arith.constant 0 : i32
    return %c0_i32, %c0_i32_0 : i32, i32
  }
  func.func @transform_2(%arg0: i32) -> (i32, i32) {
    %c0_i32 = arith.constant 0 : i32
    %c0_i32_0 = arith.constant 0 : i32
    %c0_i32_1 = arith.constant 0 : i32
    return %c0_i32, %c0_i32_0 : i32, i32
  }
  func.func @transform_3(%arg0: i32) -> (i32, i32) {
    %c0_i32 = arith.constant 0 : i32
    %c0_i32_0 = arith.constant 0 : i32
    %c0_i32_1 = arith.constant 0 : i32
    return %c0_i32, %c0_i32_0 : i32, i32
  }
  func.func @transform_4(%arg0: i32) -> (i32, i32) {
    %c0_i32 = arith.constant 0 : i32
    %c0_i32_0 = arith.constant 0 : i32
    %c0_i32_1 = arith.constant 0 : i32
    return %c0_i32, %c0_i32_0 : i32, i32
  }
  func.func @transform_5(%arg0: i32) -> (i32, i32) {
    %c0_i32 = arith.constant 0 : i32
    %c0_i32_0 = arith.constant 0 : i32
    return %arg0, %c0_i32 : i32, i32
  }
}

</mosaic_0001>

<llo_original>
// kernel: tpu_custom_call.1
$region0: #{tpu_custom_call.1}
  #allocation0 [shape = 'u32[]', space=smem, size = 0x4, offset = 0x4, fixed_abs, tag = 'smem constant byte address 0x4 - core index']
  #allocation1 [shape = 'u32[144,128]{1,0:T(1,128)}', space=vmem, size = 0x12000, scoped, tag = 'internal scratch']
  %s0 = inlined_call_operand.vmem [shape: bf16[16,64], index: 0, kind: input, shape index: {}]
  %s1 = inlined_call_operand.vmem [shape: bf16[64,256], index: 1, kind: input, shape index: {}]
  %s2 = inlined_call_operand.vmem [shape: f32[1,256], index: 2, kind: input, shape index: {}]
  %s3 = inlined_call_operand.vmem [shape: bf16[256,784], index: 3, kind: input, shape index: {}]
  %s4 = inlined_call_operand.vmem [shape: f32[1,784], index: 4, kind: input, shape index: {}]
  %s5 = inlined_call_operand.hbm [shape: f32[16,784], index: 5, kind: output, shape index: {}]
  %s6 = sld [smem:[#allocation0]]
  $region53: #{tpu_custom_call.1} parent=0
    _
  %s8 = ssub.s32 1, %s6
  %s9 = scalar_select 0, %s8, %s6
  $region1: #{tpu_custom_call.1} parent=0
    #allocation2 [shape = 'u8[57344]{0}', space=vmem, size = 0xe000, scoped, tag = 'output window, operand 0']
    #allocation3 [shape = 's32[2]{0}', space=sflag, size = 0x8, scoped, tag = 'scoped memory for tpu_custom_call.1']
    %10 = vsyncpa [#allocation3], 0
    %s11 = scalar_lea.sflag [#allocation3], 1
    %12 = vsyncpa %s11, 0
    loop: start=0, step=1, limit=4
    $region2: #{tpu_custom_call.1} parent=1 // loop_pre_header
      _
    $region3: #{tpu_custom_call.1} parent=1 // loop_header
      %s14 = sphi 0, %s18
      %p15 = scmp.ge.s32.totalorder %s14, 4
      %s24 = sphi 0, %s26
      %s27 = sphi 0, %s24
      %s28 = sphi 0, %s27
      %s44 = sphi 0, %s28
      %s48 = sphi 0, %s48
      %s50 = sphi 0, %s48
      %s51 = sphi 0, %s50
      %s65 = sphi 0, %s51
      %s69 = sphi 0, %s69
      %s71 = sphi 0, %s69
      %s72 = sphi 0, %s71
      %s86 = sphi 0, %s72
      %s90 = sphi 0, %s90
      %s92 = sphi 0, %s90
      %s93 = sphi 0, %s92
      %s107 = sphi 0, %s93
      %s111 = sphi 0, %s111
      %s113 = sphi 0, %s111
      %s114 = sphi 0, %s113
      %s128 = sphi 0, %s114
      %s134 = sphi 0, %s136
      %s137 = sphi 0, %s134
      %s138 = sphi 0, %s137
      %s154 = sphi 0, %s138
    $region4: #{tpu_custom_call.1} parent=1 // loop_header_branch
      %17 = sbr.rel (%p15) target = $region8
    $region5: #{tpu_custom_call.1} parent=1 // loop_body
      %s19 = ssub.s32 %s14, 1
      %s20 = ssub.s32 %s14, 2
      %s21 = sadd.s32 %s14, 1
      %s22 = ssub.s32 %s14, %s21
      %p23 = scmp.eq.s32.totalorder %s22, 0
      %s25 = sadd.s32 %s24, 1
      %s26 = scalar_select %p23, %s24, %s25
      %p29 = pneg %p23
      %p30 = scmp.eq.s32.totalorder %s14, 1
      %p31 = por %p29, %p30
      %p32 = scmp.ne.s32.totalorder %s24, %s27
      %p33 = scmp.eq.s32.totalorder %s14, 0
      %p34 = por %p32, %p33
      %p35 = scmp.ne.s32.totalorder %s24, %s27
      %p36 = scmp.eq.s32.totalorder %s19, 1
      %p37 = por %p35, %p36
      %p38 = scmp.ne.s32.totalorder %s27, %s28
      %p39 = scmp.eq.s32.totalorder %s19, 0
      %p40 = por %p38, %p39
      %p41 = scmp.ne.s32.totalorder %s27, %s28
      %p42 = scmp.eq.s32.totalorder %s20, 1
      %p43 = por %p41, %p42
      %p45 = scmp.ne.s32.totalorder %s28, %s44
      %p46 = scmp.eq.s32.totalorder %s20, 0
      %p47 = por %p45, %p46
      %s49 = sadd.s32 %s48, 1
      %p52 = scmp.eq.s32.totalorder %s14, 1
      %p53 = scmp.ne.s32.totalorder %s48, %s50
      %p54 = scmp.eq.s32.totalorder %s14, 0
      %p55 = por %p53, %p54
      %p56 = scmp.ne.s32.totalorder %s48, %s50
      %p57 = scmp.eq.s32.totalorder %s19, 1
      %p58 = por %p56, %p57
      %p59 = scmp.ne.s32.totalorder %s50, %s51
      %p60 = scmp.eq.s32.totalorder %s19, 0
      %p61 = por %p59, %p60
      %p62 = scmp.ne.s32.totalorder %s50, %s51
      %p63 = scmp.eq.s32.totalorder %s20, 1
      %p64 = por %p62, %p63
      %p66 = scmp.ne.s32.totalorder %s51, %s65
      %p67 = scmp.eq.s32.totalorder %s20, 0
      %p68 = por %p66, %p67
      %s70 = sadd.s32 %s69, 1
      %p73 = scmp.eq.s32.totalorder %s14, 1
      %p74 = scmp.ne.s32.totalorder %s69, %s71
      %p75 = scmp.eq.s32.totalorder %s14, 0
      %p76 = por %p74, %p75
      %p77 = scmp.ne.s32.totalorder %s69, %s71
      %p78 = scmp.eq.s32.totalorder %s19, 1
      %p79 = por %p77, %p78
      %p80 = scmp.ne.s32.totalorder %s71, %s72
      %p81 = scmp.eq.s32.totalorder %s19, 0
      %p82 = por %p80, %p81
      %p83 = scmp.ne.s32.totalorder %s71, %s72
      %p84 = scmp.eq.s32.totalorder %s20, 1
      %p85 = por %p83, %p84
      %p87 = scmp.ne.s32.totalorder %s72, %s86
      %p88 = scmp.eq.s32.totalorder %s20, 0
      %p89 = por %p87, %p88
      %s91 = sadd.s32 %s90, 1
      %p94 = scmp.eq.s32.totalorder %s14, 1
      %p95 = scmp.ne.s32.totalorder %s90, %s92
      %p96 = scmp.eq.s32.totalorder %s14, 0
      %p97 = por %p95, %p96
      %p98 = scmp.ne.s32.totalorder %s90, %s92
      %p99 = scmp.eq.s32.totalorder %s19, 1
      %p100 = por %p98, %p99
      %p101 = scmp.ne.s32.totalorder %s92, %s93
      %p102 = scmp.eq.s32.totalorder %s19, 0
      %p103 = por %p101, %p102
      %p104 = scmp.ne.s32.totalorder %s92, %s93
      %p105 = scmp.eq.s32.totalorder %s20, 1
      %p106 = por %p104, %p105
      %p108 = scmp.ne.s32.totalorder %s93, %s107
      %p109 = scmp.eq.s32.totalorder %s20, 0
      %p110 = por %p108, %p109
      %s112 = sadd.s32 %s111, 1
      %p115 = scmp.eq.s32.totalorder %s14, 1
      %p116 = scmp.ne.s32.totalorder %s111, %s113
      %p117 = scmp.eq.s32.totalorder %s14, 0
      %p118 = por %p116, %p117
      %p119 = scmp.ne.s32.totalorder %s111, %s113
      %p120 = scmp.eq.s32.totalorder %s19, 1
      %p121 = por %p119, %p120
      %p122 = scmp.ne.s32.totalorder %s113, %s114
      %p123 = scmp.eq.s32.totalorder %s19, 0
      %p124 = por %p122, %p123
      %p125 = scmp.ne.s32.totalorder %s113, %s114
      %p126 = scmp.eq.s32.totalorder %s20, 1
      %p127 = por %p125, %p126
      %p129 = scmp.ne.s32.totalorder %s114, %s128
      %p130 = scmp.eq.s32.totalorder %s20, 0
      %p131 = por %p129, %p130
      %s132 = ssub.s32 %s14, %s21
      %p133 = scmp.eq.s32.totalorder %s132, 0
      %s135 = sadd.s32 %s134, 1
      %s136 = scalar_select %p133, %s134, %s135
      %p139 = pneg %p133
      %p140 = scmp.eq.s32.totalorder %s14, 1
      %p141 = por %p139, %p140
      %p142 = scmp.ne.s32.totalorder %s134, %s137
      %p143 = scmp.eq.s32.totalorder %s14, 0
      %p144 = por %p142, %p143
      %p145 = scmp.ne.s32.totalorder %s134, %s137
      %p146 = scmp.eq.s32.totalorder %s19, 1
      %p147 = por %p145, %p146
      %p148 = scmp.ne.s32.totalorder %s137, %s138
      %p149 = scmp.eq.s32.totalorder %s19, 0
      %p150 = por %p148, %p149
      %p151 = scmp.ne.s32.totalorder %s137, %s138
      %p152 = scmp.eq.s32.totalorder %s20, 1
      %p153 = por %p151, %p152
      %p155 = scmp.ne.s32.totalorder %s138, %s154
      %p156 = scmp.eq.s32.totalorder %s20, 0
      %p157 = por %p155, %p156
      %p158 = scmp.le.s32.totalorder 1, %s14
      %p159 = scmp.lt.s32.totalorder %s14, 3
      %p160 = pnand %p158, %p159
      %p161 = pneg %p160
      // Predicated region
      $region9: #{tpu_custom_call.1} parent=5 // pred_check
        _
      $region10: #{tpu_custom_call.1} parent=5 // pred_check_branch
        %163 = sbr.rel (%p160) target = $region12
      $region11: #{tpu_custom_call.1} parent=5 // pred_region
        %s164 = ssub.s32 %s14, 1
        // Predicated region
        $region13: #{tpu_custom_call.1} parent=11 // pred_check
          %p165 = pneg %p61
        $region14: #{tpu_custom_call.1} parent=11 // pred_check_branch
          %167 = sbr.rel (%p165) target = $region16
        $region15: #{tpu_custom_call.1} parent=11 // pred_region
          _
        $region16: #{tpu_custom_call.1} parent=11 // pred_fallthru
          _
        // Predicated region
        $region17: #{tpu_custom_call.1} parent=11 // pred_check
          %p168 = pneg %p82
        $region18: #{tpu_custom_call.1} parent=11 // pred_check_branch
          %170 = sbr.rel (%p168) target = $region20
        $region19: #{tpu_custom_call.1} parent=11 // pred_region
          _
        $region20: #{tpu_custom_call.1} parent=11 // pred_fallthru
          _
        // Predicated region
        $region21: #{tpu_custom_call.1} parent=11 // pred_check
          %p171 = pneg %p103
        $region22: #{tpu_custom_call.1} parent=11 // pred_check_branch
          %173 = sbr.rel (%p171) target = $region24
        $region23: #{tpu_custom_call.1} parent=11 // pred_region
          _
        $region24: #{tpu_custom_call.1} parent=11 // pred_fallthru
          _
        // Predicated region
        $region25: #{tpu_custom_call.1} parent=11 // pred_check
          %p174 = pneg %p124
        $region26: #{tpu_custom_call.1} parent=11 // pred_check_branch
          %176 = sbr.rel (%p174) target = $region28
        $region27: #{tpu_custom_call.1} parent=11 // pred_region
          _
        $region28: #{tpu_custom_call.1} parent=11 // pred_fallthru
          _
      $region12: #{tpu_custom_call.1} parent=5 // pred_fallthru
        _
      %p177 = scmp.lt.s32.totalorder %s14, 2
      // Predicated region
      $region29: #{tpu_custom_call.1} parent=5 // pred_check
        %p178 = pneg %p177
      $region30: #{tpu_custom_call.1} parent=5 // pred_check_branch
        %180 = sbr.rel (%p178) target = $region32
      $region31: #{tpu_custom_call.1} parent=5 // pred_region
        // Predicated region
        $region33: #{tpu_custom_call.1} parent=31 // pred_check
          %p181 = pneg %p34
        $region34: #{tpu_custom_call.1} parent=31 // pred_check_branch
          %183 = sbr.rel (%p181) target = $region36
        $region35: #{tpu_custom_call.1} parent=31 // pred_region
          %p184 = scmp.lt.s32.totalorder %s14, 1
          %s185 = scalar_select %p184, %s14, 1
          %s186 = smul.addr %s185, 4
          %s187 = scalar_lea.vmem %s0, %s186
        $region36: #{tpu_custom_call.1} parent=31 // pred_fallthru
          _
      $region32: #{tpu_custom_call.1} parent=5 // pred_fallthru
        _
      %p188 = scmp.le.s32.totalorder 1, %s14
      %p189 = scmp.lt.s32.totalorder %s14, 3
      %p190 = pnand %p188, %p189
      %p191 = pneg %p190
      // Predicated region
      $region37: #{tpu_custom_call.1} parent=5 // pred_check
        _
      $region38: #{tpu_custom_call.1} parent=5 // pred_check_branch
        %193 = sbr.rel (%p190) target = $region40
      $region39: #{tpu_custom_call.1} parent=5 // pred_region
        %s194 = ssub.s32 %s14, 1
        %p195 = scmp.lt.s32.totalorder %s19, 1
        %s196 = scalar_select %p195, %s19, 1
        %s197 = smul.addr %s196, 4
        %s198 = scalar_lea.vmem %s0, %s197
        %p199 = pneg %p40
        %p200 = pneg %p37
        %p201 = pneg %p61
        %p202 = pneg %p58
        %p203 = pneg %p82
        %p204 = pneg %p79
        %p205 = pneg %p103
        %p206 = pneg %p100
        %p207 = pneg %p124
        %p208 = pneg %p121
        %p209 = pneg %p150
        %p210 = pneg %p147
        %s211 = sand.u32 %s137, 1
        %s212 = scalar_lea.sflag [#allocation3], %s211
        %s213 = sand.u32 %s137, 1
        %s214 = smul.addr %s213, 56
        %s215 = scalar_lea.vmem [#allocation2], %s214
        %p216 = scmp.lt.s32.totalorder %s19, 1
        %s217 = scalar_select %p216, %s19, 1
        %s218 = smul.addr %s217, 4
        %s219 = scalar_lea.vmem %s0, %s218
        %v221 = vld [vmem:[%s219] sm:$0xf]
        %v222 = vld [vmem:[%s1] sm:$0xff]
        %v223 = vld [vmem:[%s1 + $0x8] sm:$0xff]
        %v224 = vld [vmem:[%s1 + $0x10] sm:$0xff]
        %v225 = vld [vmem:[%s1 + $0x18] sm:$0xff]
        %v226 = vld [vmem:[%s1 + $0x20] sm:$0xff]
        %v227 = vld [vmem:[%s1 + $0x28] sm:$0xff]
        %v228 = vld [vmem:[%s1 + $0x30] sm:$0xff]
        %v229 = vld [vmem:[%s1 + $0x38] sm:$0xff]
        %v230 = vld [vmem:[%s2] sm:$0x3]
        %v232 = vlaneseq
        %v233 = vshrl.u32 %v232, 7
        %v234 = vsub.s32 0, %v233
        %v235 = vrot.slane %v230, %v234
        %v236 = vlaneseq
        %v237 = vshrl.u32 %v236, 7
        %v238 = vsub.s32 1, %v237
        %v239 = vrot.slane %v230, %v238
        %v250 = vunpack.c.l.b16 %v222
        %v251 = vunpack.c.h.b16 %v222
        %v252 = vunpack.c.l.b16 %v223
        %v253 = vunpack.c.h.b16 %v223
        %v254 = vunpack.c.l.b16 %v224
        %v255 = vunpack.c.h.b16 %v224
        %v256 = vunpack.c.l.b16 %v225
        %v257 = vunpack.c.h.b16 %v225
        %v258 = vunpack.c.l.b16 %v226
        %v259 = vunpack.c.h.b16 %v226
        %v260 = vunpack.c.l.b16 %v227
        %v261 = vunpack.c.h.b16 %v227
        %v262 = vunpack.c.l.b16 %v228
        %v263 = vunpack.c.h.b16 %v228
        %v264 = vunpack.c.l.b16 %v229
        %v265 = vunpack.c.h.b16 %v229
        %v266 = vpack.c.b16 %v252, %v250
        %v267 = vpack.c.b16 %v253, %v251
        %v268 = vpack.c.b16 %v256, %v254
        %v269 = vpack.c.b16 %v257, %v255
        %v270 = vpack.c.b16 %v260, %v258
        %v271 = vpack.c.b16 %v261, %v259
        %v272 = vpack.c.b16 %v264, %v262
        %v273 = vpack.c.b16 %v265, %v263
        %vm282 = vcmask 523264
        %v284 = vsel %vm282, %v221, 0
        %286 = vmatprep.subr.bf16.mxu0 0
        %287 = vmatpush1.bf16.msra.mxu0 0
        %288 = vmatprep.subr.bf16.mxu0 0
        %289 = vmatpush1.bf16.msra.mxu0 0
        %290 = vmatprep.subr.bf16.mxu0 0
        %291 = vmatpush1.bf16.msra.mxu0 0
        %292 = vmatprep.subr.bf16.mxu0 0
        %293 = vmatpush1.bf16.msra.mxu0 0
        %294 = vmatprep.subr.bf16.mxu0 %v273
        %295 = vmatpush1.bf16.msra.mxu0 %v272
        %296 = vmatprep.subr.bf16.mxu0 %v271
        %297 = vmatpush1.bf16.msra.mxu0 %v270
        %298 = vmatprep.subr.bf16.mxu0 %v269
        %299 = vmatpush1.bf16.msra.mxu0 %v268
        %300 = vmatprep.subr.bf16.mxu0 %v267
        %301 = vmatpush1.bf16.msra.mxu0 %v266
        %302 = vmatprep.subr.bf16.mxu0 0
        %303 = vmatpush2.bf16.msra.mxu0 0
        %304 = vmatprep.subr.bf16.mxu0 0
        %305 = vmatpush2.bf16.msra.mxu0 0
        %306 = vmatprep.subr.bf16.mxu0 0
        %307 = vmatpush2.bf16.msra.mxu0 0
        %308 = vmatprep.subr.bf16.mxu0 0
        %309 = vmatpush2.bf16.msra.mxu0 0
        %310 = vmatprep.subr.bf16.mxu0 0
        %311 = vmatpush2.bf16.msra.mxu0 0
        %312 = vmatprep.subr.bf16.mxu0 0
        %313 = vmatpush2.bf16.msra.mxu0 0
        %314 = vmatprep.subr.bf16.mxu0 0
        %315 = vmatpush2.bf16.msra.mxu0 0
        %316 = vmatprep.subr.bf16.mxu0 0
        %317 = vmatpush2.bf16.msra.mxu0 0
        %318 = vmatprep.mubr.bf16.mxu0 0
        %319 = vmatmul.mubr.bf16.gmra.mxu0 %v284
        %v320 = vpop.f32.mrf.mxu0
        %v321 = vadd.f32 %v235, %v320
        %v322 = vpop.f32.mrf.mxu0
        %v323 = vadd.f32 %v239, %v322
        %v324 = vpop.f32.mrf.mxu0
        %v325 = vpop.f32.mrf.mxu0
        %326 = vdwg.mxu0
        %v327 = vmul.f32 %v321, 0.1
        %v328 = vmul.f32 %v323, 0.1
        %v329 = vmax.f32 %v321, %v327
        %v330 = vmax.f32 %v323, %v328
        %v331 = vpack.c.bf16 %v329, %v329
        %v332 = vpack.c.bf16 %v330, %v330
        %v333 = vld [vmem:[%s3] sm:$0xff]
        %v334 = vld [vmem:[%s3 + $0x8] sm:$0xff]
        %v335 = vld [vmem:[%s3 + $0x10] sm:$0xff]
        %v336 = vld [vmem:[%s3 + $0x18] sm:$0xf]
        %v337 = vld [vmem:[%s3 + $0x1c] sm:$0xff]
        %v338 = vld [vmem:[%s3 + $0x24] sm:$0xff]
        %v339 = vld [vmem:[%s3 + $0x2c] sm:$0xff]
        %v340 = vld [vmem:[%s3 + $0x34] sm:$0xf]
        %v341 = vld [vmem:[%s3 + $0x38] sm:$0xff]
        %v342 = vld [vmem:[%s3 + $0x40] sm:$0xff]
        %v343 = vld [vmem:[%s3 + $0x48] sm:$0xff]
        %v344 = vld [vmem:[%s3 + $0x50] sm:$0xf]
        %v345 = vld [vmem:[%s3 + $0x54] sm:$0xff]
        %v346 = vld [vmem:[%s3 + $0x5c] sm:$0xff]
        %v347 = vld [vmem:[%s3 + $0x64] sm:$0xff]
        %v348 = vld [vmem:[%s3 + $0x6c] sm:$0xf]
        %v349 = vld [vmem:[%s3 + $0x70] sm:$0xff]
        %v350 = vld [vmem:[%s3 + $0x78] sm:$0xff]
        %v351 = vld [vmem:[%s3 + $0x80] sm:$0xff]
        %v352 = vld [vmem:[%s3 + $0x88] sm:$0xf]
        %v353 = vld [vmem:[%s3 + $0x8c] sm:$0xff]
        %v354 = vld [vmem:[%s3 + $0x94] sm:$0xff]
        %v355 = vld [vmem:[%s3 + $0x9c] sm:$0xff]
        %v356 = vld [vmem:[%s3 + $0xa4] sm:$0xf]
        %v357 = vld [vmem:[%s3 + $0xa8] sm:$0xff]
        %v358 = vld [vmem:[%s3 + $0xb0] sm:$0xff]
        %v359 = vld [vmem:[%s3 + $0xb8] sm:$0xff]
        %v360 = vld [vmem:[%s3 + $0xc0] sm:$0xf]
        %v361 = vld [vmem:[%s3 + $0xc4] sm:$0xff]
        %v362 = vld [vmem:[%s3 + $0xcc] sm:$0xff]
        %v363 = vld [vmem:[%s3 + $0xd4] sm:$0xff]
        %v364 = vld [vmem:[%s3 + $0xdc] sm:$0xf]
        %v365 = vld [vmem:[%s3 + $0xe0] sm:$0xff]
        %v366 = vld [vmem:[%s3 + $0xe8] sm:$0xff]
        %v367 = vld [vmem:[%s3 + $0xf0] sm:$0xff]
        %v368 = vld [vmem:[%s3 + $0xf8] sm:$0xf]
        %v369 = vld [vmem:[%s3 + $0xfc] sm:$0xff]
        %v370 = vld [vmem:[%s3 + $0x104] sm:$0xff]
        %v371 = vld [vmem:[%s3 + $0x10c] sm:$0xff]
        %v372 = vld [vmem:[%s3 + $0x114] sm:$0xf]
        %v373 = vld [vmem:[%s3 + $0x118] sm:$0xff]
        %v374 = vld [vmem:[%s3 + $0x120] sm:$0xff]
        %v375 = vld [vmem:[%s3 + $0x128] sm:$0xff]
        %v376 = vld [vmem:[%s3 + $0x130] sm:$0xf]
        %v377 = vld [vmem:[%s3 + $0x134] sm:$0xff]
        %v378 = vld [vmem:[%s3 + $0x13c] sm:$0xff]
        %v379 = vld [vmem:[%s3 + $0x144] sm:$0xff]
        %v380 = vld [vmem:[%s3 + $0x14c] sm:$0xf]
        %v381 = vld [vmem:[%s3 + $0x150] sm:$0xff]
        %v382 = vld [vmem:[%s3 + $0x158] sm:$0xff]
        %v383 = vld [vmem:[%s3 + $0x160] sm:$0xff]
        %v384 = vld [vmem:[%s3 + $0x168] sm:$0xf]
        %v385 = vld [vmem:[%s3 + $0x16c] sm:$0xff]
        %v386 = vld [vmem:[%s3 + $0x174] sm:$0xff]
        %v387 = vld [vmem:[%s3 + $0x17c] sm:$0xff]
        %v388 = vld [vmem:[%s3 + $0x184] sm:$0xf]
        %v389 = vld [vmem:[%s3 + $0x188] sm:$0xff]
        %v390 = vld [vmem:[%s3 + $0x190] sm:$0xff]
        %v391 = vld [vmem:[%s3 + $0x198] sm:$0xff]
        %v392 = vld [vmem:[%s3 + $0x1a0] sm:$0xf]
        %v393 = vld [vmem:[%s3 + $0x1a4] sm:$0xff]
        %v394 = vld [vmem:[%s3 + $0x1ac] sm:$0xff]
        %v395 = vld [vmem:[%s3 + $0x1b4] sm:$0xff]
        %v396 = vld [vmem:[%s3 + $0x1bc] sm:$0xf]
        %v397 = vld [vmem:[%s3 + $0x1c0] sm:$0xff]
        %v398 = vld [vmem:[%s3 + $0x1c8] sm:$0xff]
        %v399 = vld [vmem:[%s3 + $0x1d0] sm:$0xff]
        %v400 = vld [vmem:[%s3 + $0x1d8] sm:$0xf]
        %v401 = vld [vmem:[%s3 + $0x1dc] sm:$0xff]
        %v402 = vld [vmem:[%s3 + $0x1e4] sm:$0xff]
        %v403 = vld [vmem:[%s3 + $0x1ec] sm:$0xff]
        %v404 = vld [vmem:[%s3 + $0x1f4] sm:$0xf]
        %v405 = vld [vmem:[%s3 + $0x1f8] sm:$0xff]
        %v406 = vld [vmem:[%s3 + $0x200] sm:$0xff]
        %v407 = vld [vmem:[%s3 + $0x208] sm:$0xff]
        %v408 = vld [vmem:[%s3 + $0x210] sm:$0xf]
        %v409 = vld [vmem:[%s3 + $0x214] sm:$0xff]
        %v410 = vld [vmem:[%s3 + $0x21c] sm:$0xff]
        %v411 = vld [vmem:[%s3 + $0x224] sm:$0xff]
        %v412 = vld [vmem:[%s3 + $0x22c] sm:$0xf]
        %v413 = vld [vmem:[%s3 + $0x230] sm:$0xff]
        %v414 = vld [vmem:[%s3 + $0x238] sm:$0xff]
        %v415 = vld [vmem:[%s3 + $0x240] sm:$0xff]
        %v416 = vld [vmem:[%s3 + $0x248] sm:$0xf]
        %v417 = vld [vmem:[%s3 + $0x24c] sm:$0xff]
        %v418 = vld [vmem:[%s3 + $0x254] sm:$0xff]
        %v419 = vld [vmem:[%s3 + $0x25c] sm:$0xff]
        %v420 = vld [vmem:[%s3 + $0x264] sm:$0xf]
        %v421 = vld [vmem:[%s3 + $0x268] sm:$0xff]
        %v422 = vld [vmem:[%s3 + $0x270] sm:$0xff]
        %v423 = vld [vmem:[%s3 + $0x278] sm:$0xff]
        %v424 = vld [vmem:[%s3 + $0x280] sm:$0xf]
        %v425 = vld [vmem:[%s3 + $0x284] sm:$0xff]
        %v426 = vld [vmem:[%s3 + $0x28c] sm:$0xff]
        %v427 = vld [vmem:[%s3 + $0x294] sm:$0xff]
        %v428 = vld [vmem:[%s3 + $0x29c] sm:$0xf]
        %v429 = vld [vmem:[%s3 + $0x2a0] sm:$0xff]
        %v430 = vld [vmem:[%s3 + $0x2a8] sm:$0xff]
        %v431 = vld [vmem:[%s3 + $0x2b0] sm:$0xff]
        %v432 = vld [vmem:[%s3 + $0x2b8] sm:$0xf]
        %v433 = vld [vmem:[%s3 + $0x2bc] sm:$0xff]
        %v434 = vld [vmem:[%s3 + $0x2c4] sm:$0xff]
        %v435 = vld [vmem:[%s3 + $0x2cc] sm:$0xff]
        %v436 = vld [vmem:[%s3 + $0x2d4] sm:$0xf]
        %v437 = vld [vmem:[%s3 + $0x2d8] sm:$0xff]
        %v438 = vld [vmem:[%s3 + $0x2e0] sm:$0xff]
        %v439 = vld [vmem:[%s3 + $0x2e8] sm:$0xff]
        %v440 = vld [vmem:[%s3 + $0x2f0] sm:$0xf]
        %v441 = vld [vmem:[%s3 + $0x2f4] sm:$0xff]
        %v442 = vld [vmem:[%s3 + $0x2fc] sm:$0xff]
        %v443 = vld [vmem:[%s3 + $0x304] sm:$0xff]
        %v444 = vld [vmem:[%s3 + $0x30c] sm:$0xf]
        %v445 = vld [vmem:[%s3 + $0x310] sm:$0xff]
        %v446 = vld [vmem:[%s3 + $0x318] sm:$0xff]
        %v447 = vld [vmem:[%s3 + $0x320] sm:$0xff]
        %v448 = vld [vmem:[%s3 + $0x328] sm:$0xf]
        %v449 = vld [vmem:[%s3 + $0x32c] sm:$0xff]
        %v450 = vld [vmem:[%s3 + $0x334] sm:$0xff]
        %v451 = vld [vmem:[%s3 + $0x33c] sm:$0xff]
        %v452 = vld [vmem:[%s3 + $0x344] sm:$0xf]
        %v453 = vld [vmem:[%s3 + $0x348] sm:$0xff]
        %v454 = vld [vmem:[%s3 + $0x350] sm:$0xff]
        %v455 = vld [vmem:[%s3 + $0x358] sm:$0xff]
        %v456 = vld [vmem:[%s3 + $0x360] sm:$0xf]
        %v457 = vld [vmem:[%s3 + $0x364] sm:$0xff]
        %v458 = vld [vmem:[%s3 + $0x36c] sm:$0xff]
        %v459 = vld [vmem:[%s3 + $0x374] sm:$0xff]
        %v460 = vld [vmem:[%s3 + $0x37c] sm:$0xf]
        %v461 = vld [vmem:[%s4] sm:$0x7f]
        %v463 = vlaneseq
        %v464 = vshrl.u32 %v463, 7
        %v465 = vsub.s32 0, %v464
        %v466 = vrot.slane %v461, %v465
        %v467 = vlaneseq
        %v468 = vshrl.u32 %v467, 7
        %v469 = vsub.s32 1, %v468
        %v470 = vrot.slane %v461, %v469
        %v471 = vlaneseq
        %v472 = vshrl.u32 %v471, 7
        %v473 = vsub.s32 2, %v472
        %v474 = vrot.slane %v461, %v473
        %v475 = vlaneseq
        %v476 = vshrl.u32 %v475, 7
        %v477 = vsub.s32 3, %v476
        %v478 = vrot.slane %v461, %v477
        %v479 = vlaneseq
        %v480 = vshrl.u32 %v479, 7
        %v481 = vsub.s32 4, %v480
        %v482 = vrot.slane %v461, %v481
        %v483 = vlaneseq
        %v484 = vshrl.u32 %v483, 7
        %v485 = vsub.s32 5, %v484
        %v486 = vrot.slane %v461, %v485
        %v487 = vlaneseq
        %v488 = vshrl.u32 %v487, 7
        %v489 = vsub.s32 6, %v488
        %v490 = vrot.slane %v461, %v489
        %v626 = vunpack.c.l.b16 %v333
        %v627 = vunpack.c.h.b16 %v333
        %v628 = vunpack.c.l.b16 %v334
        %v629 = vunpack.c.h.b16 %v334
        %v630 = vunpack.c.l.b16 %v335
        %v631 = vunpack.c.h.b16 %v335
        %v632 = vunpack.c.l.b16 %v336
        %v633 = vunpack.c.l.b16 %v337
        %v634 = vunpack.c.h.b16 %v337
        %v635 = vunpack.c.l.b16 %v338
        %v636 = vunpack.c.h.b16 %v338
        %v637 = vunpack.c.l.b16 %v339
        %v638 = vunpack.c.h.b16 %v339
        %v639 = vunpack.c.l.b16 %v340
        %v640 = vunpack.c.l.b16 %v341
        %v641 = vunpack.c.h.b16 %v341
        %v642 = vunpack.c.l.b16 %v342
        %v643 = vunpack.c.h.b16 %v342
        %v644 = vunpack.c.l.b16 %v343
        %v645 = vunpack.c.h.b16 %v343
        %v646 = vunpack.c.l.b16 %v344
        %v647 = vunpack.c.l.b16 %v345
        %v648 = vunpack.c.h.b16 %v345
        %v649 = vunpack.c.l.b16 %v346
        %v650 = vunpack.c.h.b16 %v346
        %v651 = vunpack.c.l.b16 %v347
        %v652 = vunpack.c.h.b16 %v347
        %v653 = vunpack.c.l.b16 %v348
        %v654 = vunpack.c.l.b16 %v349
        %v655 = vunpack.c.h.b16 %v349
        %v656 = vunpack.c.l.b16 %v350
        %v657 = vunpack.c.h.b16 %v350
        %v658 = vunpack.c.l.b16 %v351
        %v659 = vunpack.c.h.b16 %v351
        %v660 = vunpack.c.l.b16 %v352
        %v661 = vunpack.c.l.b16 %v353
        %v662 = vunpack.c.h.b16 %v353
        %v663 = vunpack.c.l.b16 %v354
        %v664 = vunpack.c.h.b16 %v354
        %v665 = vunpack.c.l.b16 %v355
        %v666 = vunpack.c.h.b16 %v355
        %v667 = vunpack.c.l.b16 %v356
        %v668 = vunpack.c.l.b16 %v357
        %v669 = vunpack.c.h.b16 %v357
        %v670 = vunpack.c.l.b16 %v358
        %v671 = vunpack.c.h.b16 %v358
        %v672 = vunpack.c.l.b16 %v359
        %v673 = vunpack.c.h.b16 %v359
        %v674 = vunpack.c.l.b16 %v360
        %v675 = vunpack.c.l.b16 %v361
        %v676 = vunpack.c.h.b16 %v361
        %v677 = vunpack.c.l.b16 %v362
        %v678 = vunpack.c.h.b16 %v362
        %v679 = vunpack.c.l.b16 %v363
        %v680 = vunpack.c.h.b16 %v363
        %v681 = vunpack.c.l.b16 %v364
        %v682 = vunpack.c.l.b16 %v365
        %v683 = vunpack.c.h.b16 %v365
        %v684 = vunpack.c.l.b16 %v366
        %v685 = vunpack.c.h.b16 %v366
        %v686 = vunpack.c.l.b16 %v367
        %v687 = vunpack.c.h.b16 %v367
        %v688 = vunpack.c.l.b16 %v368
        %v689 = vunpack.c.l.b16 %v369
        %v690 = vunpack.c.h.b16 %v369
        %v691 = vunpack.c.l.b16 %v370
        %v692 = vunpack.c.h.b16 %v370
        %v693 = vunpack.c.l.b16 %v371
        %v694 = vunpack.c.h.b16 %v371
        %v695 = vunpack.c.l.b16 %v372
        %v696 = vunpack.c.l.b16 %v373
        %v697 = vunpack.c.h.b16 %v373
        %v698 = vunpack.c.l.b16 %v374
        %v699 = vunpack.c.h.b16 %v374
        %v700 = vunpack.c.l.b16 %v375
        %v701 = vunpack.c.h.b16 %v375
        %v702 = vunpack.c.l.b16 %v376
        %v703 = vunpack.c.l.b16 %v377
        %v704 = vunpack.c.h.b16 %v377
        %v705 = vunpack.c.l.b16 %v378
        %v706 = vunpack.c.h.b16 %v378
        %v707 = vunpack.c.l.b16 %v379
        %v708 = vunpack.c.h.b16 %v379
        %v709 = vunpack.c.l.b16 %v380
        %v710 = vunpack.c.l.b16 %v381
        %v711 = vunpack.c.h.b16 %v381
        %v712 = vunpack.c.l.b16 %v382
        %v713 = vunpack.c.h.b16 %v382
        %v714 = vunpack.c.l.b16 %v383
        %v715 = vunpack.c.h.b16 %v383
        %v716 = vunpack.c.l.b16 %v384
        %v717 = vunpack.c.l.b16 %v385
        %v718 = vunpack.c.h.b16 %v385
        %v719 = vunpack.c.l.b16 %v386
        %v720 = vunpack.c.h.b16 %v386
        %v721 = vunpack.c.l.b16 %v387
        %v722 = vunpack.c.h.b16 %v387
        %v723 = vunpack.c.l.b16 %v388
        %v724 = vunpack.c.l.b16 %v389
        %v725 = vunpack.c.h.b16 %v389
        %v726 = vunpack.c.l.b16 %v390
        %v727 = vunpack.c.h.b16 %v390
        %v728 = vunpack.c.l.b16 %v391
        %v729 = vunpack.c.h.b16 %v391
        %v730 = vunpack.c.l.b16 %v392
        %v731 = vunpack.c.l.b16 %v393
        %v732 = vunpack.c.h.b16 %v393
        %v733 = vunpack.c.l.b16 %v394
        %v734 = vunpack.c.h.b16 %v394
        %v735 = vunpack.c.l.b16 %v395
        %v736 = vunpack.c.h.b16 %v395
        %v737 = vunpack.c.l.b16 %v396
        %v738 = vunpack.c.l.b16 %v397
        %v739 = vunpack.c.h.b16 %v397
        %v740 = vunpack.c.l.b16 %v398
        %v741 = vunpack.c.h.b16 %v398
        %v742 = vunpack.c.l.b16 %v399
        %v743 = vunpack.c.h.b16 %v399
        %v744 = vunpack.c.l.b16 %v400
        %v745 = vunpack.c.l.b16 %v401
        %v746 = vunpack.c.h.b16 %v401
        %v747 = vunpack.c.l.b16 %v402
        %v748 = vunpack.c.h.b16 %v402
        %v749 = vunpack.c.l.b16 %v403
        %v750 = vunpack.c.h.b16 %v403
        %v751 = vunpack.c.l.b16 %v404
        %v752 = vunpack.c.l.b16 %v405
        %v753 = vunpack.c.h.b16 %v405
        %v754 = vunpack.c.l.b16 %v406
        %v755 = vunpack.c.h.b16 %v406
        %v756 = vunpack.c.l.b16 %v407
        %v757 = vunpack.c.h.b16 %v407
        %v758 = vunpack.c.l.b16 %v408
        %v759 = vunpack.c.l.b16 %v409
        %v760 = vunpack.c.h.b16 %v409
        %v761 = vunpack.c.l.b16 %v410
        %v762 = vunpack.c.h.b16 %v410
        %v763 = vunpack.c.l.b16 %v411
        %v764 = vunpack.c.h.b16 %v411
        %v765 = vunpack.c.l.b16 %v412
        %v766 = vunpack.c.l.b16 %v413
        %v767 = vunpack.c.h.b16 %v413
        %v768 = vunpack.c.l.b16 %v414
        %v769 = vunpack.c.h.b16 %v414
        %v770 = vunpack.c.l.b16 %v415
        %v771 = vunpack.c.h.b16 %v415
        %v772 = vunpack.c.l.b16 %v416
        %v773 = vunpack.c.l.b16 %v417
        %v774 = vunpack.c.h.b16 %v417
        %v775 = vunpack.c.l.b16 %v418
        %v776 = vunpack.c.h.b16 %v418
        %v777 = vunpack.c.l.b16 %v419
        %v778 = vunpack.c.h.b16 %v419
        %v779 = vunpack.c.l.b16 %v420
        %v780 = vunpack.c.l.b16 %v421
        %v781 = vunpack.c.h.b16 %v421
        %v782 = vunpack.c.l.b16 %v422
        %v783 = vunpack.c.h.b16 %v422
        %v784 = vunpack.c.l.b16 %v423
        %v785 = vunpack.c.h.b16 %v423
        %v786 = vunpack.c.l.b16 %v424
        %v787 = vunpack.c.l.b16 %v425
        %v788 = vunpack.c.h.b16 %v425
        %v789 = vunpack.c.l.b16 %v426
        %v790 = vunpack.c.h.b16 %v426
        %v791 = vunpack.c.l.b16 %v427
        %v792 = vunpack.c.h.b16 %v427
        %v793 = vunpack.c.l.b16 %v428
        %v794 = vunpack.c.l.b16 %v429
        %v795 = vunpack.c.h.b16 %v429
        %v796 = vunpack.c.l.b16 %v430
        %v797 = vunpack.c.h.b16 %v430
        %v798 = vunpack.c.l.b16 %v431
        %v799 = vunpack.c.h.b16 %v431
        %v800 = vunpack.c.l.b16 %v432
        %v801 = vunpack.c.l.b16 %v433
        %v802 = vunpack.c.h.b16 %v433
        %v803 = vunpack.c.l.b16 %v434
        %v804 = vunpack.c.h.b16 %v434
        %v805 = vunpack.c.l.b16 %v435
        %v806 = vunpack.c.h.b16 %v435
        %v807 = vunpack.c.l.b16 %v436
        %v808 = vunpack.c.l.b16 %v437
        %v809 = vunpack.c.h.b16 %v437
        %v810 = vunpack.c.l.b16 %v438
        %v811 = vunpack.c.h.b16 %v438
        %v812 = vunpack.c.l.b16 %v439
        %v813 = vunpack.c.h.b16 %v439
        %v814 = vunpack.c.l.b16 %v440
        %v815 = vunpack.c.l.b16 %v441
        %v816 = vunpack.c.h.b16 %v441
        %v817 = vunpack.c.l.b16 %v442
        %v818 = vunpack.c.h.b16 %v442
        %v819 = vunpack.c.l.b16 %v443
        %v820 = vunpack.c.h.b16 %v443
        %v821 = vunpack.c.l.b16 %v444
        %v822 = vunpack.c.l.b16 %v445
        %v823 = vunpack.c.h.b16 %v445
        %v824 = vunpack.c.l.b16 %v446
        %v825 = vunpack.c.h.b16 %v446
        %v826 = vunpack.c.l.b16 %v447
        %v827 = vunpack.c.h.b16 %v447
        %v828 = vunpack.c.l.b16 %v448
        %v829 = vunpack.c.l.b16 %v449
        %v830 = vunpack.c.h.b16 %v449
        %v831 = vunpack.c.l.b16 %v450
        %v832 = vunpack.c.h.b16 %v450
        %v833 = vunpack.c.l.b16 %v451
        %v834 = vunpack.c.h.b16 %v451
        %v835 = vunpack.c.l.b16 %v452
        %v836 = vunpack.c.l.b16 %v453
        %v837 = vunpack.c.h.b16 %v453
        %v838 = vunpack.c.l.b16 %v454
        %v839 = vunpack.c.h.b16 %v454
        %v840 = vunpack.c.l.b16 %v455
        %v841 = vunpack.c.h.b16 %v455
        %v842 = vunpack.c.l.b16 %v456
        %v843 = vunpack.c.l.b16 %v457
        %v844 = vunpack.c.h.b16 %v457
        %v845 = vunpack.c.l.b16 %v458
        %v846 = vunpack.c.h.b16 %v458
        %v847 = vunpack.c.l.b16 %v459
        %v848 = vunpack.c.h.b16 %v459
        %v849 = vunpack.c.l.b16 %v460
        %v850 = vpack.c.b16 %v633, %v626
        %v851 = vpack.c.b16 %v634, %v627
        %v852 = vpack.c.b16 %v635, %v628
        %v853 = vpack.c.b16 %v636, %v629
        %v854 = vpack.c.b16 %v637, %v630
        %v855 = vpack.c.b16 %v638, %v631
        %v856 = vpack.c.b16 %v639, %v632
        %v857 = vpack.c.b16 %v647, %v640
        %v858 = vpack.c.b16 %v648, %v641
        %v859 = vpack.c.b16 %v649, %v642
        %v860 = vpack.c.b16 %v650, %v643
        %v861 = vpack.c.b16 %v651, %v644
        %v862 = vpack.c.b16 %v652, %v645
        %v863 = vpack.c.b16 %v653, %v646
        %v864 = vpack.c.b16 %v661, %v654
        %v865 = vpack.c.b16 %v662, %v655
        %v866 = vpack.c.b16 %v663, %v656
        %v867 = vpack.c.b16 %v664, %v657
        %v868 = vpack.c.b16 %v665, %v658
        %v869 = vpack.c.b16 %v666, %v659
        %v870 = vpack.c.b16 %v667, %v660
        %v871 = vpack.c.b16 %v675, %v668
        %v872 = vpack.c.b16 %v676, %v669
        %v873 = vpack.c.b16 %v677, %v670
        %v874 = vpack.c.b16 %v678, %v671
        %v875 = vpack.c.b16 %v679, %v672
        %v876 = vpack.c.b16 %v680, %v673
        %v877 = vpack.c.b16 %v681, %v674
        %v878 = vpack.c.b16 %v689, %v682
        %v879 = vpack.c.b16 %v690, %v683
        %v880 = vpack.c.b16 %v691, %v684
        %v881 = vpack.c.b16 %v692, %v685
        %v882 = vpack.c.b16 %v693, %v686
        %v883 = vpack.c.b16 %v694, %v687
        %v884 = vpack.c.b16 %v695, %v688
        %v885 = vpack.c.b16 %v703, %v696
        %v886 = vpack.c.b16 %v704, %v697
        %v887 = vpack.c.b16 %v705, %v698
        %v888 = vpack.c.b16 %v706, %v699
        %v889 = vpack.c.b16 %v707, %v700
        %v890 = vpack.c.b16 %v708, %v701
        %v891 = vpack.c.b16 %v709, %v702
        %v892 = vpack.c.b16 %v717, %v710
        %v893 = vpack.c.b16 %v718, %v711
        %v894 = vpack.c.b16 %v719, %v712
        %v895 = vpack.c.b16 %v720, %v713
        %v896 = vpack.c.b16 %v721, %v714
        %v897 = vpack.c.b16 %v722, %v715
        %v898 = vpack.c.b16 %v723, %v716
        %v899 = vpack.c.b16 %v731, %v724
        %v900 = vpack.c.b16 %v732, %v725
        %v901 = vpack.c.b16 %v733, %v726
        %v902 = vpack.c.b16 %v734, %v727
        %v903 = vpack.c.b16 %v735, %v728
        %v904 = vpack.c.b16 %v736, %v729
        %v905 = vpack.c.b16 %v737, %v730
        %v906 = vpack.c.b16 %v745, %v738
        %v907 = vpack.c.b16 %v746, %v739
        %v908 = vpack.c.b16 %v747, %v740
        %v909 = vpack.c.b16 %v748, %v741
        %v910 = vpack.c.b16 %v749, %v742
        %v911 = vpack.c.b16 %v750, %v743
        %v912 = vpack.c.b16 %v751, %v744
        %v913 = vpack.c.b16 %v759, %v752
        %v914 = vpack.c.b16 %v760, %v753
        %v915 = vpack.c.b16 %v761, %v754
        %v916 = vpack.c.b16 %v762, %v755
        %v917 = vpack.c.b16 %v763, %v756
        %v918 = vpack.c.b16 %v764, %v757
        %v919 = vpack.c.b16 %v765, %v758
        %v920 = vpack.c.b16 %v773, %v766
        %v921 = vpack.c.b16 %v774, %v767
        %v922 = vpack.c.b16 %v775, %v768
        %v923 = vpack.c.b16 %v776, %v769
        %v924 = vpack.c.b16 %v777, %v770
        %v925 = vpack.c.b16 %v778, %v771
        %v926 = vpack.c.b16 %v779, %v772
        %v927 = vpack.c.b16 %v787, %v780
        %v928 = vpack.c.b16 %v788, %v781
        %v929 = vpack.c.b16 %v789, %v782
        %v930 = vpack.c.b16 %v790, %v783
        %v931 = vpack.c.b16 %v791, %v784
        %v932 = vpack.c.b16 %v792, %v785
        %v933 = vpack.c.b16 %v793, %v786
        %v934 = vpack.c.b16 %v801, %v794
        %v935 = vpack.c.b16 %v802, %v795
        %v936 = vpack.c.b16 %v803, %v796
        %v937 = vpack.c.b16 %v804, %v797
        %v938 = vpack.c.b16 %v805, %v798
        %v939 = vpack.c.b16 %v806, %v799
        %v940 = vpack.c.b16 %v807, %v800
        %v941 = vpack.c.b16 %v815, %v808
        %v942 = vpack.c.b16 %v816, %v809
        %v943 = vpack.c.b16 %v817, %v810
        %v944 = vpack.c.b16 %v818, %v811
        %v945 = vpack.c.b16 %v819, %v812
        %v946 = vpack.c.b16 %v820, %v813
        %v947 = vpack.c.b16 %v821, %v814
        %v948 = vpack.c.b16 %v829, %v822
        %v949 = vpack.c.b16 %v830, %v823
        %v950 = vpack.c.b16 %v831, %v824
        %v951 = vpack.c.b16 %v832, %v825
        %v952 = vpack.c.b16 %v833, %v826
        %v953 = vpack.c.b16 %v834, %v827
        %v954 = vpack.c.b16 %v835, %v828
        %v955 = vpack.c.b16 %v843, %v836
        %v956 = vpack.c.b16 %v844, %v837
        %v957 = vpack.c.b16 %v845, %v838
        %v958 = vpack.c.b16 %v846, %v839
        %v959 = vpack.c.b16 %v847, %v840
        %v960 = vpack.c.b16 %v848, %v841
        %v961 = vpack.c.b16 %v849, %v842
        %1074 = vmatprep.subr.bf16.mxu0 %v900
        %1075 = vmatpush1.bf16.msra.mxu0 %v899
        %1076 = vmatprep.subr.bf16.mxu0 %v893
        %1077 = vmatpush1.bf16.msra.mxu0 %v892
        %1078 = vmatprep.subr.bf16.mxu0 %v886
        %1079 = vmatpush1.bf16.msra.mxu0 %v885
        %1080 = vmatprep.subr.bf16.mxu0 %v879
        %1081 = vmatpush1.bf16.msra.mxu0 %v878
        %1082 = vmatprep.subr.bf16.mxu0 %v872
        %1083 = vmatpush1.bf16.msra.mxu0 %v871
        %1084 = vmatprep.subr.bf16.mxu0 %v865
        %1085 = vmatpush1.bf16.msra.mxu0 %v864
        %1086 = vmatprep.subr.bf16.mxu0 %v858
        %1087 = vmatpush1.bf16.msra.mxu0 %v857
        %1088 = vmatprep.subr.bf16.mxu0 %v851
        %1089 = vmatpush1.bf16.msra.mxu0 %v850
        %1090 = vmatprep.subr.bf16.mxu0 %v956
        %1091 = vmatpush2.bf16.msra.mxu0 %v955
        %1092 = vmatprep.subr.bf16.mxu0 %v949
        %1093 = vmatpush2.bf16.msra.mxu0 %v948
        %1094 = vmatprep.subr.bf16.mxu0 %v942
        %1095 = vmatpush2.bf16.msra.mxu0 %v941
        %1096 = vmatprep.subr.bf16.mxu0 %v935
        %1097 = vmatpush2.bf16.msra.mxu0 %v934
        %1098 = vmatprep.subr.bf16.mxu0 %v928
        %1099 = vmatpush2.bf16.msra.mxu0 %v927
        %1100 = vmatprep.subr.bf16.mxu0 %v921
        %1101 = vmatpush2.bf16.msra.mxu0 %v920
        %1102 = vmatprep.subr.bf16.mxu0 %v914
        %1103 = vmatpush2.bf16.msra.mxu0 %v913
        %1104 = vmatprep.subr.bf16.mxu0 %v907
        %1105 = vmatpush2.bf16.msra.mxu0 %v906
        %1106 = vmatprep.mubr.bf16.mxu0 %v332
        %1107 = vmatmul.mubr.bf16.gmra.mxu0 %v331
        %v1108 = vpop.f32.mrf.mxu0
        %v1109 = vadd.f32 %v466, %v1108
        %v1110 = vpop.f32.mrf.mxu0
        %v1111 = vadd.f32 %v470, %v1110
        %v1112 = vpop.f32.mrf.mxu0
        %v1113 = vpop.f32.mrf.mxu0
        %1114 = vdwg.mxu0
        %1115 = vmatprep.subr.bf16.mxu0 %v902
        %1116 = vmatpush1.bf16.msra.mxu0 %v901
        %1117 = vmatprep.subr.bf16.mxu0 %v895
        %1118 = vmatpush1.bf16.msra.mxu0 %v894
        %1119 = vmatprep.subr.bf16.mxu0 %v888
        %1120 = vmatpush1.bf16.msra.mxu0 %v887
        %1121 = vmatprep.subr.bf16.mxu0 %v881
        %1122 = vmatpush1.bf16.msra.mxu0 %v880
        %1123 = vmatprep.subr.bf16.mxu0 %v874
        %1124 = vmatpush1.bf16.msra.mxu0 %v873
        %1125 = vmatprep.subr.bf16.mxu0 %v867
        %1126 = vmatpush1.bf16.msra.mxu0 %v866
        %1127 = vmatprep.subr.bf16.mxu0 %v860
        %1128 = vmatpush1.bf16.msra.mxu0 %v859
        %1129 = vmatprep.subr.bf16.mxu0 %v853
        %1130 = vmatpush1.bf16.msra.mxu0 %v852
        %1131 = vmatprep.subr.bf16.mxu0 %v958
        %1132 = vmatpush2.bf16.msra.mxu0 %v957
        %1133 = vmatprep.subr.bf16.mxu0 %v951
        %1134 = vmatpush2.bf16.msra.mxu0 %v950
        %1135 = vmatprep.subr.bf16.mxu0 %v944
        %1136 = vmatpush2.bf16.msra.mxu0 %v943
        %1137 = vmatprep.subr.bf16.mxu0 %v937
        %1138 = vmatpush2.bf16.msra.mxu0 %v936
        %1139 = vmatprep.subr.bf16.mxu0 %v930
        %1140 = vmatpush2.bf16.msra.mxu0 %v929
        %1141 = vmatprep.subr.bf16.mxu0 %v923
        %1142 = vmatpush2.bf16.msra.mxu0 %v922
        %1143 = vmatprep.subr.bf16.mxu0 %v916
        %1144 = vmatpush2.bf16.msra.mxu0 %v915
        %1145 = vmatprep.subr.bf16.mxu0 %v909
        %1146 = vmatpush2.bf16.msra.mxu0 %v908
        %1147 = vmatprep.mubr.bf16.mxu0 %v332
        %1148 = vmatmul.mubr.bf16.gmra.mxu0 %v331
        %v1149 = vpop.f32.mrf.mxu0
        %v1150 = vadd.f32 %v474, %v1149
        %v1151 = vpop.f32.mrf.mxu0
        %v1152 = vadd.f32 %v478, %v1151
        %v1153 = vpop.f32.mrf.mxu0
        %v1154 = vpop.f32.mrf.mxu0
        %1155 = vdwg.mxu0
        %1156 = vmatprep.subr.bf16.mxu0 %v904
        %1157 = vmatpush1.bf16.msra.mxu0 %v903
        %1158 = vmatprep.subr.bf16.mxu0 %v897
        %1159 = vmatpush1.bf16.msra.mxu0 %v896
        %1160 = vmatprep.subr.bf16.mxu0 %v890
        %1161 = vmatpush1.bf16.msra.mxu0 %v889
        %1162 = vmatprep.subr.bf16.mxu0 %v883
        %1163 = vmatpush1.bf16.msra.mxu0 %v882
        %1164 = vmatprep.subr.bf16.mxu0 %v876
        %1165 = vmatpush1.bf16.msra.mxu0 %v875
        %1166 = vmatprep.subr.bf16.mxu0 %v869
        %1167 = vmatpush1.bf16.msra.mxu0 %v868
        %1168 = vmatprep.subr.bf16.mxu0 %v862
        %1169 = vmatpush1.bf16.msra.mxu0 %v861
        %1170 = vmatprep.subr.bf16.mxu0 %v855
        %1171 = vmatpush1.bf16.msra.mxu0 %v854
        %1172 = vmatprep.subr.bf16.mxu0 %v960
        %1173 = vmatpush2.bf16.msra.mxu0 %v959
        %1174 = vmatprep.subr.bf16.mxu0 %v953
        %1175 = vmatpush2.bf16.msra.mxu0 %v952
        %1176 = vmatprep.subr.bf16.mxu0 %v946
        %1177 = vmatpush2.bf16.msra.mxu0 %v945
        %1178 = vmatprep.subr.bf16.mxu0 %v939
        %1179 = vmatpush2.bf16.msra.mxu0 %v938
        %1180 = vmatprep.subr.bf16.mxu0 %v932
        %1181 = vmatpush2.bf16.msra.mxu0 %v931
        %1182 = vmatprep.subr.bf16.mxu0 %v925
        %1183 = vmatpush2.bf16.msra.mxu0 %v924
        %1184 = vmatprep.subr.bf16.mxu0 %v918
        %1185 = vmatpush2.bf16.msra.mxu0 %v917
        %1186 = vmatprep.subr.bf16.mxu0 %v911
        %1187 = vmatpush2.bf16.msra.mxu0 %v910
        %1188 = vmatprep.mubr.bf16.mxu0 %v332
        %1189 = vmatmul.mubr.bf16.gmra.mxu0 %v331
        %v1190 = vpop.f32.mrf.mxu0
        %v1191 = vadd.f32 %v482, %v1190
        %v1192 = vpop.f32.mrf.mxu0
        %v1193 = vadd.f32 %v486, %v1192
        %v1194 = vpop.f32.mrf.mxu0
        %v1195 = vpop.f32.mrf.mxu0
        %1196 = vdwg.mxu0
        %1197 = vmatprep.subr.bf16.mxu0 0
        %1198 = vmatpush1.bf16.msra.mxu0 %v905
        %1199 = vmatprep.subr.bf16.mxu0 0
        %1200 = vmatpush1.bf16.msra.mxu0 %v898
        %1201 = vmatprep.subr.bf16.mxu0 0
        %1202 = vmatpush1.bf16.msra.mxu0 %v891
        %1203 = vmatprep.subr.bf16.mxu0 0
        %1204 = vmatpush1.bf16.msra.mxu0 %v884
        %1205 = vmatprep.subr.bf16.mxu0 0
        %1206 = vmatpush1.bf16.msra.mxu0 %v877
        %1207 = vmatprep.subr.bf16.mxu0 0
        %1208 = vmatpush1.bf16.msra.mxu0 %v870
        %1209 = vmatprep.subr.bf16.mxu0 0
        %1210 = vmatpush1.bf16.msra.mxu0 %v863
        %1211 = vmatprep.subr.bf16.mxu0 0
        %1212 = vmatpush1.bf16.msra.mxu0 %v856
        %1213 = vmatprep.subr.bf16.mxu0 0
        %1214 = vmatpush2.bf16.msra.mxu0 %v961
        %1215 = vmatprep.subr.bf16.mxu0 0
        %1216 = vmatpush2.bf16.msra.mxu0 %v954
        %1217 = vmatprep.subr.bf16.mxu0 0
        %1218 = vmatpush2.bf16.msra.mxu0 %v947
        %1219 = vmatprep.subr.bf16.mxu0 0
        %1220 = vmatpush2.bf16.msra.mxu0 %v940
        %1221 = vmatprep.subr.bf16.mxu0 0
        %1222 = vmatpush2.bf16.msra.mxu0 %v933
        %1223 = vmatprep.subr.bf16.mxu0 0
        %1224 = vmatpush2.bf16.msra.mxu0 %v926
        %1225 = vmatprep.subr.bf16.mxu0 0
        %1226 = vmatpush2.bf16.msra.mxu0 %v919
        %1227 = vmatprep.subr.bf16.mxu0 0
        %1228 = vmatpush2.bf16.msra.mxu0 %v912
        %1229 = vmatprep.mubr.bf16.mxu0 %v332
        %1230 = vmatmul.mubr.bf16.gmra.mxu0 %v331
        %v1231 = vpop.f32.mrf.mxu0
        %v1232 = vadd.f32 %v490, %v1231
        %v1233 = vpop.f32.mrf.mxu0
        %v1234 = vpop.f32.mrf.mxu0
        %v1235 = vpop.f32.mrf.mxu0
        %1236 = vdwg.mxu0
        %v1237 = vtanh.pop %v1109
        %v1238 = vtanh.pop %v1111
        %v1239 = vtanh.pop %v1150
        %v1240 = vtanh.pop %v1152
        %v1241 = vtanh.pop %v1191
        %v1242 = vtanh.pop %v1193
        %v1243 = vtanh.pop %v1232
        %1244 = vst [vmem:[%s215] sm:$0xff] %v1237
        %1245 = vst [vmem:[%s215 + $0x8] sm:$0xff] %v1238
        %1246 = vst [vmem:[%s215 + $0x10] sm:$0xff] %v1239
        %1247 = vst [vmem:[%s215 + $0x18] sm:$0xff] %v1240
        %1248 = vst [vmem:[%s215 + $0x20] sm:$0xff] %v1241
        %1249 = vst [vmem:[%s215 + $0x28] sm:$0xff] %v1242
        %vm1250 = vcmask 130048
        %1251 = vst.msk [vmem:[%s215 + $0x30] sm:$0xff] %vm1250, %v1243
        %s1252 = sand.u32 %s137, 1
        %s1253 = scalar_lea.sflag [#allocation3], %s1252
        %s1254 = sand.u32 %s137, 1
        %s1255 = smul.addr %s1254, 56
        %s1256 = scalar_lea.vmem [#allocation2], %s1255
        // Predicated region
        $region41: #{tpu_custom_call.1} parent=39 // pred_check
          %p1257 = pneg %p147
        $region42: #{tpu_custom_call.1} parent=39 // pred_check_branch
          %1259 = sbr.rel (%p1257) target = $region44
        $region43: #{tpu_custom_call.1} parent=39 // pred_region
          %s1261 = ssub.s32 896, 896
          %1262 = vsyncadd %s1253, %s1261
          %s1263 = smul.addr %s19, 7
          %s1264 = smul.addr %s1263, 128
          %s1265 = scalar_lea.hbm %s5, %s1264
          %s1267 = sshll.u32 %s1256, 4
          %s1268 = int_to_ptr.vmem [resolvable:$true] %s1267
          %1270 = dma.vmem_to_hbm [thread:$0]  %s1268, 896, %s1265, %s1253
        $region44: #{tpu_custom_call.1} parent=39 // pred_fallthru
          _
      $region40: #{tpu_custom_call.1} parent=5 // pred_fallthru
        _
      %p1271 = scmp.le.s32.totalorder 2, %s14
      // Predicated region
      $region45: #{tpu_custom_call.1} parent=5 // pred_check
        %p1272 = pneg %p1271
      $region46: #{tpu_custom_call.1} parent=5 // pred_check_branch
        %1274 = sbr.rel (%p1272) target = $region48
      $region47: #{tpu_custom_call.1} parent=5 // pred_region
        %s1275 = ssub.s32 %s14, 2
        // Predicated region
        $region49: #{tpu_custom_call.1} parent=47 // pred_check
          %p1276 = pneg %p153
        $region50: #{tpu_custom_call.1} parent=47 // pred_check_branch
          %1278 = sbr.rel (%p1276) target = $region52
        $region51: #{tpu_custom_call.1} parent=47 // pred_region
          %s1279 = sand.u32 %s138, 1
          %s1280 = scalar_lea.sflag [#allocation3], %s1279
          %s1281 = sand.u32 %s138, 1
          %s1282 = smul.addr %s1281, 56
          %s1283 = scalar_lea.vmem [#allocation2], %s1282
          %1284 = dma.done %s1280, 896
        $region52: #{tpu_custom_call.1} parent=47 // pred_fallthru
          _
      $region48: #{tpu_custom_call.1} parent=5 // pred_fallthru
        _
    $region6: #{tpu_custom_call.1} parent=1 // loop_footer
      %s18 = sadd.s32 1, %s14
    $region7: #{tpu_custom_call.1} parent=1 // loop_footer_branch
      %13 = sbr.rel target = $region3
    $region8: #{tpu_custom_call.1} parent=1 // loop_exit
      _
    %1285 = vsyncpa [#allocation3], 1
    %s1286 = scalar_lea.sflag [#allocation3], 1
    %1287 = vsyncpa %s1286, 1

</llo_original>
